<compile_context>
chip_gen: v7x
topology: tpu7x:2x2x1
jax: 0.10.0
libtpu: 0.0.40
codegen_flags: <defaults>
</compile_context>

<pallas_src>
import functools

import jax
import jax.numpy as jnp
from jax.experimental import pallas as pl
from jax.experimental.pallas import tpu as pltpu


def embedding_layer_kernel(x_ref, w_ref, out_ref, *,
                           onehot_num, genre_size, max_vocab):
    x = x_ref[...]                                    # (TB, F) int32
    tb, f = x.shape
    k_cat = onehot_num * max_vocab
    k_tot = k_cat + genre_size

    # Genre multi-hot, pre-scaled by 1/sum(g) so the fused matmul needs no
    # post-scaling.  NOTE: matches torch semantics — an all-zero genre row
    # yields NaN (q == 0); clamp q here if production data can contain that.
    g = x[:, f - genre_size:].astype(jnp.float32)     # (TB, genre_size)
    q = jnp.sum(g, axis=-1, keepdims=True)            # (TB, 1)
    g = g * pl.reciprocal(q, approx=False)            # EUP reciprocal, VPU mul

    # Fused (TB, k_tot) one-hot / multi-hot operand, built from ONE iota.
    # Categorical block i occupies columns [i*max_vocab, (i+1)*max_vocab);
    # the genre block occupies the last genre_size columns.
    iota = jax.lax.broadcasted_iota(jnp.int32, (tb, k_tot), 1)
    combined = jnp.zeros((tb, k_tot), jnp.float32)
    for i in range(onehot_num):
        # Out-of-range indices land on zero rows of W (documented behavior).
        combined += (iota == (x[:, i:i + 1] + i * max_vocab)).astype(jnp.float32)
    for j in range(genre_size):
        # Place the (already 1/q-scaled) genre values via cheap VPU selects.
        combined += (iota == (k_cat + j)).astype(jnp.float32) * g[:, j:j + 1]

    # Single MXU push; single lane-dense unmasked store of the whole tile.
    out_ref[...] = jnp.dot(combined, w_ref[...],
                           preferred_element_type=jnp.float32,
                           precision=jax.lax.Precision.HIGHEST)


def _round_up(n, m):
    return (n + m - 1) // m * m


def embedding_layer(x, tables, genre_embed, *, onehot_num, genre_size,
                    block_b=256):
    B, F = x.shape
    _, max_vocab, d_model = tables.shape
    k_cat = onehot_num * max_vocab
    k_tot = k_cat + genre_size
    n_out = (onehot_num + 1) * d_model

    # Fused block-diagonal weight (tiny, static): row/col block i holds
    # embedding table i; the final row/col block holds the genre embedding.
    w = jnp.zeros((k_tot, n_out), jnp.float32)
    for i in range(onehot_num):
        w = w.at[i * max_vocab:(i + 1) * max_vocab,
                 i * d_model:(i + 1) * d_model].set(tables[i])
    w = w.at[k_cat:, onehot_num * d_model:].set(genre_embed)

    # Batch tile: multiple of 8 sublanes; modest so double-buffered x/out tiles
    # stay far under v7x's 64 MiB VMEM even for large batches.
    tb = min(block_b, _round_up(B, 8))
    b_pad = _round_up(B, tb)
    x_p = x if b_pad == B else jnp.pad(x, ((0, b_pad - B), (0, 0)))

    kernel = functools.partial(
        embedding_layer_kernel,
        onehot_num=onehot_num, genre_size=genre_size, max_vocab=max_vocab)

    out = pl.pallas_call(
        kernel,
        out_shape=jax.ShapeDtypeStruct((b_pad, n_out), jnp.float32),
        grid=(b_pad // tb,),
        in_specs=[
            pl.BlockSpec((tb, F), lambda i: (i, 0)),            # per-step x tile
            pl.BlockSpec((k_tot, n_out), lambda i: (0, 0)),     # resident fused W
        ],
        out_specs=pl.BlockSpec((tb, n_out), lambda i: (i, 0)),  # lane-dense slab
        compiler_params=pltpu.CompilerParams(
            dimension_semantics=("parallel",)),                 # megacore-friendly
    )(x_p, w)

    # Layout plumbing outside the kernel: (B, (onehot_num+1)*d_model) ->
    # (B, onehot_num+1, d_model).
    return out[:B].reshape(B, onehot_num + 1, d_model)


def reference(x, tables, genre_embed, *, onehot_num, genre_size):
    outs = []
    for i in range(onehot_num):
        outs.append(tables[i][x[:, i]][:, None, :])          # exact f32 gather
    g = x[:, -genre_size:].astype(jnp.float32)
    q = g.sum(-1, keepdims=True)
    ge = jnp.dot(g, genre_embed,
                 precision=jax.lax.Precision.HIGHEST) / q
    outs.append(ge[:, None, :])
    return jnp.concatenate(outs, axis=1)


if __name__ == "__main__":
    # Small shapes consistent with the module's forward.
    d_model = 32
    onehot_size = (7, 11, 5)          # per-feature vocab sizes
    genre_size = 10
    onehot_num = len(onehot_size)
    batch = 8
    max_vocab = max(onehot_size)

    key = jax.random.PRNGKey(0)
    k_tabs, k_genre, k_idx, k_g = jax.random.split(key, 4)

    # nn.Embedding weights ~ N(0,1); pad each table to max_vocab, then stack.
    tab_keys = jax.random.split(k_tabs, onehot_num)
    tables = jnp.stack([
        jnp.pad(jax.random.normal(tab_keys[i], (onehot_size[i], d_model),
                                  dtype=jnp.float32),
                ((0, max_vocab - onehot_size[i]), (0, 0)))
        for i in range(onehot_num)
    ])                                                  # (onehot_num, max_vocab, d_model)

    # genre_embed = nn.Parameter(torch.randn(genre_size, d_model))
    genre_embed = jax.random.normal(k_genre, (genre_size, d_model), dtype=jnp.float32)

    # Input x: categorical indices followed by a 0/1 multi-hot genre vector.
    idx_keys = jax.random.split(k_idx, onehot_num)
    idx_cols = [jax.random.randint(idx_keys[i], (batch, 1), 0, onehot_size[i],
                                   dtype=jnp.int32)
                for i in range(onehot_num)]
    genres = jax.random.bernoulli(k_g, 0.4, (batch, genre_size)).astype(jnp.int32)
    genres = genres.at[:, 0].set(1)   # ensure q > 0 (avoid NaN like torch would give)
    x = jnp.concatenate(idx_cols + [genres], axis=1).astype(jnp.int32)  # (B, F)

    out = embedding_layer(x, tables, genre_embed,
                          onehot_num=onehot_num, genre_size=genre_size)
    out = jax.block_until_ready(out)

    ref = reference(x, tables, genre_embed,
                    onehot_num=onehot_num, genre_size=genre_size)
    assert out.shape == (batch, onehot_num + 1, d_model), out.shape
    assert jnp.allclose(out, ref, rtol=1e-4, atol=1e-4), "mismatch vs reference"

    print("KERNEL_OK")
</pallas_src>

<mosaic_0001>
module attributes {stable_mosaic.version = 11 : i64} {
  func.func @embedding_layer_kernel(%arg0: i32, %arg1: memref<8x13xi32, #tpu.memory_space<vmem>>, %arg2: memref<43x128xf32, #tpu.memory_space<vmem>>, %arg3: memref<8x128xf32, #tpu.memory_space<vmem>>) attributes {dimension_semantics = [#tpu.dimension_semantics<parallel>], iteration_bounds = array<i64: 1>, scalar_prefetch = 0 : i64, scratch_operands = 0 : i64, tpu.core_type = #tpu.core_type<tc>, window_params = [{transform_indices = @transform_0, window_bounds = array<i64: 8, 13>}, {pipeline_mode = #tpu.pipeline_mode<synchronous>, transform_indices = @transform_1, window_bounds = array<i64: 43, 128>}, {transform_indices = @transform_2, window_bounds = array<i64: 8, 128>}]} {
    %c0 = arith.constant 0 : index
    %c0_0 = arith.constant 0 : index
    %0 = vector.load %arg1[%c0, %c0_0] : memref<8x13xi32, #tpu.memory_space<vmem>>, vector<8x13xi32>
    %1 = vector.extract_strided_slice %0 {offsets = [0, 3], sizes = [8, 10], strides = [1, 1]} : vector<8x13xi32> to vector<8x10xi32>
    %2 = arith.sitofp %1 : vector<8x10xi32> to vector<8x10xf32>
    %cst = arith.constant dense<0.000000e+00> : vector<8xf32>
    %3 = vector.multi_reduction <add>, %2, %cst [1] : vector<8x10xf32> to vector<8xf32>
    %4 = vector.shape_cast %3 : vector<8xf32> to vector<8x1xf32>
    %5 = tpu.reciprocal %4 : vector<8x1xf32> -> vector<8x1xf32>
    %6 = vector.broadcast %5 : vector<8x1xf32> to vector<8x10xf32>
    %7 = arith.mulf %2, %6 : vector<8x10xf32>
    %8 = tpu.iota {dimensions = array<i32: 1>} : vector<8x43xi32>
    %cst_1 = arith.constant 0.000000e+00 : f32
    %9 = vector.broadcast %cst_1 : f32 to vector<8x43xf32>
    %10 = vector.extract_strided_slice %0 {offsets = [0, 0], sizes = [8, 1], strides = [1, 1]} : vector<8x13xi32> to vector<8x1xi32>
    %c0_i32 = arith.constant 0 : i32
    %11 = vector.broadcast %c0_i32 : i32 to vector<8x1xi32>
    %12 = arith.addi %10, %11 : vector<8x1xi32>
    %13 = vector.broadcast %12 : vector<8x1xi32> to vector<8x43xi32>
    %14 = arith.cmpi eq, %8, %13 : vector<8x43xi32>
    %15 = arith.extui %14 : vector<8x43xi1> to vector<8x43xi32>
    %16 = arith.sitofp %15 : vector<8x43xi32> to vector<8x43xf32>
    %17 = arith.addf %9, %16 : vector<8x43xf32>
    %18 = vector.extract_strided_slice %0 {offsets = [0, 1], sizes = [8, 1], strides = [1, 1]} : vector<8x13xi32> to vector<8x1xi32>
    %c11_i32 = arith.constant 11 : i32
    %19 = vector.broadcast %c11_i32 : i32 to vector<8x1xi32>
    %20 = arith.addi %18, %19 : vector<8x1xi32>
    %21 = vector.broadcast %20 : vector<8x1xi32> to vector<8x43xi32>
    %22 = arith.cmpi eq, %8, %21 : vector<8x43xi32>
    %23 = arith.extui %22 : vector<8x43xi1> to vector<8x43xi32>
    %24 = arith.sitofp %23 : vector<8x43xi32> to vector<8x43xf32>
    %25 = arith.addf %17, %24 : vector<8x43xf32>
    %26 = vector.extract_strided_slice %0 {offsets = [0, 2], sizes = [8, 1], strides = [1, 1]} : vector<8x13xi32> to vector<8x1xi32>
    %c22_i32 = arith.constant 22 : i32
    %27 = vector.broadcast %c22_i32 : i32 to vector<8x1xi32>
    %28 = arith.addi %26, %27 : vector<8x1xi32>
    %29 = vector.broadcast %28 : vector<8x1xi32> to vector<8x43xi32>
    %30 = arith.cmpi eq, %8, %29 : vector<8x43xi32>
    %31 = arith.extui %30 : vector<8x43xi1> to vector<8x43xi32>
    %32 = arith.sitofp %31 : vector<8x43xi32> to vector<8x43xf32>
    %33 = arith.addf %25, %32 : vector<8x43xf32>
    %c33_i32 = arith.constant 33 : i32
    %34 = vector.broadcast %c33_i32 : i32 to vector<8x43xi32>
    %35 = arith.cmpi eq, %8, %34 : vector<8x43xi32>
    %36 = arith.extui %35 : vector<8x43xi1> to vector<8x43xi32>
    %37 = arith.sitofp %36 : vector<8x43xi32> to vector<8x43xf32>
    %38 = vector.extract_strided_slice %7 {offsets = [0, 0], sizes = [8, 1], strides = [1, 1]} : vector<8x10xf32> to vector<8x1xf32>
    %39 = vector.broadcast %38 : vector<8x1xf32> to vector<8x43xf32>
    %40 = arith.mulf %37, %39 : vector<8x43xf32>
    %41 = arith.addf %33, %40 : vector<8x43xf32>
    %c34_i32 = arith.constant 34 : i32
    %42 = vector.broadcast %c34_i32 : i32 to vector<8x43xi32>
    %43 = arith.cmpi eq, %8, %42 : vector<8x43xi32>
    %44 = arith.extui %43 : vector<8x43xi1> to vector<8x43xi32>
    %45 = arith.sitofp %44 : vector<8x43xi32> to vector<8x43xf32>
    %46 = vector.extract_strided_slice %7 {offsets = [0, 1], sizes = [8, 1], strides = [1, 1]} : vector<8x10xf32> to vector<8x1xf32>
    %47 = vector.broadcast %46 : vector<8x1xf32> to vector<8x43xf32>
    %48 = arith.mulf %45, %47 : vector<8x43xf32>
    %49 = arith.addf %41, %48 : vector<8x43xf32>
    %c35_i32 = arith.constant 35 : i32
    %50 = vector.broadcast %c35_i32 : i32 to vector<8x43xi32>
    %51 = arith.cmpi eq, %8, %50 : vector<8x43xi32>
    %52 = arith.extui %51 : vector<8x43xi1> to vector<8x43xi32>
    %53 = arith.sitofp %52 : vector<8x43xi32> to vector<8x43xf32>
    %54 = vector.extract_strided_slice %7 {offsets = [0, 2], sizes = [8, 1], strides = [1, 1]} : vector<8x10xf32> to vector<8x1xf32>
    %55 = vector.broadcast %54 : vector<8x1xf32> to vector<8x43xf32>
    %56 = arith.mulf %53, %55 : vector<8x43xf32>
    %57 = arith.addf %49, %56 : vector<8x43xf32>
    %c36_i32 = arith.constant 36 : i32
    %58 = vector.broadcast %c36_i32 : i32 to vector<8x43xi32>
    %59 = arith.cmpi eq, %8, %58 : vector<8x43xi32>
    %60 = arith.extui %59 : vector<8x43xi1> to vector<8x43xi32>
    %61 = arith.sitofp %60 : vector<8x43xi32> to vector<8x43xf32>
    %62 = vector.extract_strided_slice %7 {offsets = [0, 3], sizes = [8, 1], strides = [1, 1]} : vector<8x10xf32> to vector<8x1xf32>
    %63 = vector.broadcast %62 : vector<8x1xf32> to vector<8x43xf32>
    %64 = arith.mulf %61, %63 : vector<8x43xf32>
    %65 = arith.addf %57, %64 : vector<8x43xf32>
    %c37_i32 = arith.constant 37 : i32
    %66 = vector.broadcast %c37_i32 : i32 to vector<8x43xi32>
    %67 = arith.cmpi eq, %8, %66 : vector<8x43xi32>
    %68 = arith.extui %67 : vector<8x43xi1> to vector<8x43xi32>
    %69 = arith.sitofp %68 : vector<8x43xi32> to vector<8x43xf32>
    %70 = vector.extract_strided_slice %7 {offsets = [0, 4], sizes = [8, 1], strides = [1, 1]} : vector<8x10xf32> to vector<8x1xf32>
    %71 = vector.broadcast %70 : vector<8x1xf32> to vector<8x43xf32>
    %72 = arith.mulf %69, %71 : vector<8x43xf32>
    %73 = arith.addf %65, %72 : vector<8x43xf32>
    %c38_i32 = arith.constant 38 : i32
    %74 = vector.broadcast %c38_i32 : i32 to vector<8x43xi32>
    %75 = arith.cmpi eq, %8, %74 : vector<8x43xi32>
    %76 = arith.extui %75 : vector<8x43xi1> to vector<8x43xi32>
    %77 = arith.sitofp %76 : vector<8x43xi32> to vector<8x43xf32>
    %78 = vector.extract_strided_slice %7 {offsets = [0, 5], sizes = [8, 1], strides = [1, 1]} : vector<8x10xf32> to vector<8x1xf32>
    %79 = vector.broadcast %78 : vector<8x1xf32> to vector<8x43xf32>
    %80 = arith.mulf %77, %79 : vector<8x43xf32>
    %81 = arith.addf %73, %80 : vector<8x43xf32>
    %c39_i32 = arith.constant 39 : i32
    %82 = vector.broadcast %c39_i32 : i32 to vector<8x43xi32>
    %83 = arith.cmpi eq, %8, %82 : vector<8x43xi32>
    %84 = arith.extui %83 : vector<8x43xi1> to vector<8x43xi32>
    %85 = arith.sitofp %84 : vector<8x43xi32> to vector<8x43xf32>
    %86 = vector.extract_strided_slice %7 {offsets = [0, 6], sizes = [8, 1], strides = [1, 1]} : vector<8x10xf32> to vector<8x1xf32>
    %87 = vector.broadcast %86 : vector<8x1xf32> to vector<8x43xf32>
    %88 = arith.mulf %85, %87 : vector<8x43xf32>
    %89 = arith.addf %81, %88 : vector<8x43xf32>
    %c40_i32 = arith.constant 40 : i32
    %90 = vector.broadcast %c40_i32 : i32 to vector<8x43xi32>
    %91 = arith.cmpi eq, %8, %90 : vector<8x43xi32>
    %92 = arith.extui %91 : vector<8x43xi1> to vector<8x43xi32>
    %93 = arith.sitofp %92 : vector<8x43xi32> to vector<8x43xf32>
    %94 = vector.extract_strided_slice %7 {offsets = [0, 7], sizes = [8, 1], strides = [1, 1]} : vector<8x10xf32> to vector<8x1xf32>
    %95 = vector.broadcast %94 : vector<8x1xf32> to vector<8x43xf32>
    %96 = arith.mulf %93, %95 : vector<8x43xf32>
    %97 = arith.addf %89, %96 : vector<8x43xf32>
    %c41_i32 = arith.constant 41 : i32
    %98 = vector.broadcast %c41_i32 : i32 to vector<8x43xi32>
    %99 = arith.cmpi eq, %8, %98 : vector<8x43xi32>
    %100 = arith.extui %99 : vector<8x43xi1> to vector<8x43xi32>
    %101 = arith.sitofp %100 : vector<8x43xi32> to vector<8x43xf32>
    %102 = vector.extract_strided_slice %7 {offsets = [0, 8], sizes = [8, 1], strides = [1, 1]} : vector<8x10xf32> to vector<8x1xf32>
    %103 = vector.broadcast %102 : vector<8x1xf32> to vector<8x43xf32>
    %104 = arith.mulf %101, %103 : vector<8x43xf32>
    %105 = arith.addf %97, %104 : vector<8x43xf32>
    %c42_i32 = arith.constant 42 : i32
    %106 = vector.broadcast %c42_i32 : i32 to vector<8x43xi32>
    %107 = arith.cmpi eq, %8, %106 : vector<8x43xi32>
    %108 = arith.extui %107 : vector<8x43xi1> to vector<8x43xi32>
    %109 = arith.sitofp %108 : vector<8x43xi32> to vector<8x43xf32>
    %110 = vector.extract_strided_slice %7 {offsets = [0, 9], sizes = [8, 1], strides = [1, 1]} : vector<8x10xf32> to vector<8x1xf32>
    %111 = vector.broadcast %110 : vector<8x1xf32> to vector<8x43xf32>
    %112 = arith.mulf %109, %111 : vector<8x43xf32>
    %113 = arith.addf %105, %112 : vector<8x43xf32>
    %c0_2 = arith.constant 0 : index
    %c0_3 = arith.constant 0 : index
    %114 = vector.load %arg2[%c0_2, %c0_3] : memref<43x128xf32, #tpu.memory_space<vmem>>, vector<43x128xf32>
    %cst_4 = arith.constant dense<0.000000e+00> : vector<8x128xf32>
    %115 = tpu.matmul %113, %114, %cst_4 {dimension_numbers = #tpu.dot_dimension_numbers<[1], [0], [0], [1], [0, 0, 1, 1], [], []>, precision = #tpu.contract_precision<fp32>} : vector<8x43xf32>, vector<43x128xf32>, vector<8x128xf32> -> vector<8x128xf32>
    %c0_5 = arith.constant 0 : index
    %c0_6 = arith.constant 0 : index
    %116 = vector.load %arg3[%c0_5, %c0_6] : memref<8x128xf32, #tpu.memory_space<vmem>>, vector<8x128xf32>
    tpu.vector_store %arg3[%c0_5, %c0_6], %115 {strides = array<i32>} : memref<8x128xf32, #tpu.memory_space<vmem>>, vector<8x128xf32>,
    return
  }
  func.func @transform_0(%arg0: i32) -> (i32, i32) {
    %c0_i32 = arith.constant 0 : i32
    %c0_i32_0 = arith.constant 0 : i32
    return %arg0, %c0_i32 : i32, i32
  }
  func.func @transform_1(%arg0: i32) -> (i32, i32) {
    %c0_i32 = arith.constant 0 : i32
    %c0_i32_0 = arith.constant 0 : i32
    %c0_i32_1 = arith.constant 0 : i32
    return %c0_i32, %c0_i32_0 : i32, i32
  }
  func.func @transform_2(%arg0: i32) -> (i32, i32) {
    %c0_i32 = arith.constant 0 : i32
    %c0_i32_0 = arith.constant 0 : i32
    return %arg0, %c0_i32 : i32, i32
  }
}

</mosaic_0001>

<llo_original>
// kernel: tpu_custom_call.1
$region0: #{tpu_custom_call.1}
  #allocation0 [shape = 'u32[]', space=smem, size = 0x4, offset = 0x4, fixed_abs, tag = 'smem constant byte address 0x4 - core index']
  #allocation1 [shape = 'u32[144,128]{1,0:T(1,128)}', space=vmem, size = 0x12000, scoped, tag = 'internal scratch']
  %s0 = inlined_call_operand.hbm [shape: s32[8,13], index: 0, kind: input, shape index: {}]
  %s1 = inlined_call_operand.hbm [shape: f32[43,128], index: 1, kind: input, shape index: {}]
  %s2 = inlined_call_operand.hbm [shape: f32[8,128], index: 2, kind: output, shape index: {}]
  %s3 = sld [smem:[#allocation0]]
  $region26: #{tpu_custom_call.1} parent=0
    _
  %s5 = ssub.s32 1, %s3
  %s6 = scalar_select 0, %s5, %s3
  $region1: #{tpu_custom_call.1} parent=0
    #allocation2 [shape = 'u8[4096]{0}', space=vmem, size = 0x1000, scoped, tag = 'input window, operand 0, single buffered']
    #allocation3 [shape = 's32[1]{0}', space=sflag, size = 0x4, scoped, tag = 'scoped memory for tpu_custom_call.1']
    #allocation4 [shape = 's32[1]{0}', space=sflag, size = 0x4, scoped, tag = 'scoped memory for tpu_custom_call.1']
    #allocation5 [shape = 'u8[24576]{0}', space=vmem, size = 0x6000, scoped, tag = 'input window, operand 1, single buffered']
    #allocation6 [shape = 's32[1]{0}', space=sflag, size = 0x4, scoped, tag = 'scoped memory for tpu_custom_call.1']
    #allocation7 [shape = 'u8[4096]{0}', space=vmem, size = 0x1000, scoped, tag = 'output window, operand 0, single buffered']
    %7 = vsyncpa [#allocation3], 0
    %8 = vsyncpa [#allocation6], 0
    %9 = vsyncpa [#allocation4], 0
    // Predicated region
    $region2: #{tpu_custom_call.1} parent=1 // pred_check
      _
    $region3: #{tpu_custom_call.1} parent=1 // pred_check_branch
      %11 = sbr.rel (0) target = $region5
    $region4: #{tpu_custom_call.1} parent=1 // pred_region
      %s13 = ssub.s32 128, 128
      %14 = vsyncadd [#allocation3], %s13
      %s16 = sshll.u32 [#allocation2], 4
      %s17 = int_to_ptr.vmem [resolvable:$true] %s16
      %19 = dma.hbm_to_vmem [thread:$0]  %s0, 128, %s17, [#allocation3]
    $region5: #{tpu_custom_call.1} parent=1 // pred_fallthru
      _
    // Predicated region
    $region6: #{tpu_custom_call.1} parent=1 // pred_check
      _
    $region7: #{tpu_custom_call.1} parent=1 // pred_check_branch
      %21 = sbr.rel (0) target = $region9
    $region8: #{tpu_custom_call.1} parent=1 // pred_region
      %s23 = ssub.s32 768, 768
      %24 = vsyncadd [#allocation6], %s23
      %s25 = sshll.u32 [#allocation5], 4
      %s26 = int_to_ptr.vmem [resolvable:$true] %s25
      %31 = dma.hbm_to_vmem [thread:$0]  %s1, 768, %s26, [#allocation6], 128, 128, 8
    $region9: #{tpu_custom_call.1} parent=1 // pred_fallthru
      _
    // Predicated region
    $region10: #{tpu_custom_call.1} parent=1 // pred_check
      _
    $region11: #{tpu_custom_call.1} parent=1 // pred_check_branch
      %33 = sbr.rel (0) target = $region13
    $region12: #{tpu_custom_call.1} parent=1 // pred_region
      %34 = dma.done [#allocation3], 128
    $region13: #{tpu_custom_call.1} parent=1 // pred_fallthru
      _
    // Predicated region
    $region14: #{tpu_custom_call.1} parent=1 // pred_check
      _
    $region15: #{tpu_custom_call.1} parent=1 // pred_check_branch
      %36 = sbr.rel (0) target = $region17
    $region16: #{tpu_custom_call.1} parent=1 // pred_region
      %37 = dma.done [#allocation6], 768
    $region17: #{tpu_custom_call.1} parent=1 // pred_fallthru
      _
    %v38 = vld [vmem:[#allocation2] sm:$0xff]
    %v39 = vcvt.s32.f32 %v38
    %41 = vrot.lane.b32.xlu0 %v39, 125
    %v42 = vpop.permute.xlu0 %41
    %vm44 = vcmask 80896
    %v45 = vsel %vm44, %v42, 0.0
    %46 = vadd.xlane.f32.xlu0 %v45
    %v47 = vpop.xlane.xlu0 %46
    %v48 = vrcp.pop %v47
    %v49 = vmul.f32 %v39, %v48
    %v50 = vlaneseq
    %v51 = vand.u32 %v50, 127
    %52 = vset.pattern.permute.xlu0 0
    %53 = vperm.xlu0 %52, %v38
    %v54 = vpop.permute.xlu0 %53
    %vm55 = vcmp.eq.s32.totalorder %v51, %v54
    %v56 = vsel %vm55, 1, 0
    %v57 = vcvt.s32.f32 %v56
    %v58 = vadd.f32 %v57, 0.0
    %v59 = vadd.s32 %v38, 11
    %60 = vset.pattern.permute.xlu0 1
    %61 = vperm.xlu0 %60, %v59
    %v62 = vpop.permute.xlu0 %61
    %vm63 = vcmp.eq.s32.totalorder %v51, %v62
    %v64 = vsel %vm63, 1, 0
    %v65 = vcvt.s32.f32 %v64
    %v66 = vadd.f32 %v58, %v65
    %v67 = vadd.s32 %v38, 22
    %68 = vset.pattern.permute.xlu0 2
    %69 = vperm.xlu0 %68, %v67
    %v70 = vpop.permute.xlu0 %69
    %vm71 = vcmp.eq.s32.totalorder %v51, %v70
    %v72 = vsel %vm71, 1, 0
    %v73 = vcvt.s32.f32 %v72
    %v74 = vadd.f32 %v66, %v73
    %vm75 = vcmp.eq.s32.totalorder %v51, 33
    %v76 = vsel %vm75, 1, 0
    %v77 = vcvt.s32.f32 %v76
    %79 = vset.pattern.permute.xlu0 3
    %80 = vperm.xlu0 %79, %v49
    %v81 = vpop.permute.xlu0 %80
    %v83 = vmul.f32 %v77, %v81
    %v84 = vadd.f32 %v74, %v83
    %vm85 = vcmp.eq.s32.totalorder %v51, 34
    %v86 = vsel %vm85, 1, 0
    %v87 = vcvt.s32.f32 %v86
    %88 = vset.pattern.permute.xlu0 4
    %89 = vperm.xlu0 %88, %v49
    %v90 = vpop.permute.xlu0 %89
    %v92 = vmul.f32 %v87, %v90
    %v93 = vadd.f32 %v84, %v92
    %vm94 = vcmp.eq.s32.totalorder %v51, 35
    %v95 = vsel %vm94, 1, 0
    %v96 = vcvt.s32.f32 %v95
    %97 = vset.pattern.permute.xlu0 5
    %98 = vperm.xlu0 %97, %v49
    %v99 = vpop.permute.xlu0 %98
    %v101 = vmul.f32 %v96, %v99
    %v102 = vadd.f32 %v93, %v101
    %vm103 = vcmp.eq.s32.totalorder %v51, 36
    %v104 = vsel %vm103, 1, 0
    %v105 = vcvt.s32.f32 %v104
    %106 = vset.pattern.permute.xlu0 6
    %107 = vperm.xlu0 %106, %v49
    %v108 = vpop.permute.xlu0 %107
    %v110 = vmul.f32 %v105, %v108
    %v111 = vadd.f32 %v102, %v110
    %vm112 = vcmp.eq.s32.totalorder %v51, 37
    %v113 = vsel %vm112, 1, 0
    %v114 = vcvt.s32.f32 %v113
    %115 = vset.pattern.permute.xlu0 7
    %116 = vperm.xlu0 %115, %v49
    %v117 = vpop.permute.xlu0 %116
    %v119 = vmul.f32 %v114, %v117
    %v120 = vadd.f32 %v111, %v119
    %vm121 = vcmp.eq.s32.totalorder %v51, 38
    %v122 = vsel %vm121, 1, 0
    %v123 = vcvt.s32.f32 %v122
    %124 = vset.pattern.permute.xlu0 8
    %125 = vperm.xlu0 %124, %v49
    %v126 = vpop.permute.xlu0 %125
    %v128 = vmul.f32 %v123, %v126
    %v129 = vadd.f32 %v120, %v128
    %vm130 = vcmp.eq.s32.totalorder %v51, 39
    %v131 = vsel %vm130, 1, 0
    %v132 = vcvt.s32.f32 %v131
    %133 = vset.pattern.permute.xlu0 9
    %134 = vperm.xlu0 %133, %v49
    %v135 = vpop.permute.xlu0 %134
    %v137 = vmul.f32 %v132, %v135
    %v138 = vadd.f32 %v129, %v137
    %vm139 = vcmp.eq.s32.totalorder %v51, 40
    %v140 = vsel %vm139, 1, 0
    %v141 = vcvt.s32.f32 %v140
    %142 = vset.pattern.permute.xlu0 10
    %143 = vperm.xlu0 %142, %v49
    %v144 = vpop.permute.xlu0 %143
    %v146 = vmul.f32 %v141, %v144
    %v147 = vadd.f32 %v138, %v146
    %vm148 = vcmp.eq.s32.totalorder %v51, 41
    %v149 = vsel %vm148, 1, 0
    %v150 = vcvt.s32.f32 %v149
    %151 = vset.pattern.permute.xlu0 11
    %152 = vperm.xlu0 %151, %v49
    %v153 = vpop.permute.xlu0 %152
    %v155 = vmul.f32 %v150, %v153
    %v156 = vadd.f32 %v147, %v155
    %vm157 = vcmp.eq.s32.totalorder %v51, 42
    %v158 = vsel %vm157, 1, 0
    %v159 = vcvt.s32.f32 %v158
    %160 = vset.pattern.permute.xlu0 12
    %161 = vperm.xlu0 %160, %v49
    %v162 = vpop.permute.xlu0 %161
    %v164 = vmul.f32 %v159, %v162
    %v165 = vadd.f32 %v156, %v164
    %v166 = vld [vmem:[#allocation5] sm:$0xff]
    %v167 = vld [vmem:[#allocation5 + $0x8] sm:$0xff]
    %v168 = vld [vmem:[#allocation5 + $0x10] sm:$0xff]
    %v169 = vld [vmem:[#allocation5 + $0x18] sm:$0xff]
    %v170 = vld [vmem:[#allocation5 + $0x20] sm:$0xff]
    %v171 = vld [vmem:[#allocation5 + $0x28] sm:$0x7]
    %vm172 = vcmask 351232
    %v174 = vsel %vm172, %v165, 0
    %vm176 = vcmask 1042432
    %v178 = vsel %vm176, %v171, 0
    %180 = vmatprep.subr.mxu0 0.0
    %v181 = vand.u32 %v166, 4294901760
    %182 = vmatpush1.msra.mxu0 %v181
    %183 = vmatprep.subr.mxu0 0.0
    %v184 = vand.u32 %v167, 4294901760
    %185 = vmatpush1.msra.mxu0 %v184
    %186 = vmatprep.subr.mxu0 0.0
    %v187 = vand.u32 %v168, 4294901760
    %188 = vmatpush1.msra.mxu0 %v187
    %189 = vmatprep.subr.mxu0 0.0
    %v190 = vand.u32 %v169, 4294901760
    %191 = vmatpush1.msra.mxu0 %v190
    %192 = vmatprep.subr.mxu0 0.0
    %v193 = vand.u32 %v170, 4294901760
    %194 = vmatpush1.msra.mxu0 %v193
    %195 = vmatprep.subr.mxu0 0.0
    %v196 = vand.u32 %v178, 4294901760
    %197 = vmatpush1.msra.mxu0 %v196
    %198 = vmatprep.subr.mxu0 0.0
    %199 = vmatpush1.msra.mxu0 0.0
    %200 = vmatprep.subr.mxu0 0.0
    %201 = vmatpush1.msra.mxu0 0.0
    %202 = vmatprep.subr.mxu0 0.0
    %203 = vmatpush1.msra.mxu0 0.0
    %204 = vmatprep.subr.mxu0 0.0
    %205 = vmatpush1.msra.mxu0 0.0
    %206 = vmatprep.subr.mxu0 0.0
    %207 = vmatpush1.msra.mxu0 0.0
    %208 = vmatprep.subr.mxu0 0.0
    %209 = vmatpush1.msra.mxu0 0.0
    %210 = vmatprep.subr.mxu0 0.0
    %211 = vmatpush1.msra.mxu0 0.0
    %212 = vmatprep.subr.mxu0 0.0
    %213 = vmatpush1.msra.mxu0 0.0
    %214 = vmatprep.subr.mxu0 0.0
    %215 = vmatpush1.msra.mxu0 0.0
    %216 = vmatprep.subr.mxu0 0.0
    %217 = vmatpush1.msra.mxu0 0.0
    %218 = vmatprep.subr.mxu0 0.0
    %219 = vmatpush1.msra.mxu0 0.0
    %220 = vmatprep.subr.mxu0 0.0
    %221 = vmatpush1.msra.mxu0 0.0
    %222 = vmatprep.subr.mxu0 0.0
    %223 = vmatpush1.msra.mxu0 0.0
    %224 = vmatprep.subr.mxu0 0.0
    %225 = vmatpush1.msra.mxu0 0.0
    %226 = vmatprep.subr.mxu0 0.0
    %227 = vmatpush1.msra.mxu0 0.0
    %228 = vmatprep.subr.mxu0 0.0
    %229 = vmatpush1.msra.mxu0 0.0
    %230 = vmatprep.subr.mxu0 0.0
    %231 = vmatpush1.msra.mxu0 0.0
    %232 = vmatprep.subr.mxu0 0.0
    %233 = vmatpush1.msra.mxu0 0.0
    %234 = vmatprep.subr.mxu0 0.0
    %235 = vmatpush1.msra.mxu0 0.0
    %236 = vmatprep.subr.mxu0 0.0
    %237 = vmatpush1.msra.mxu0 0.0
    %238 = vmatprep.subr.mxu0 0.0
    %239 = vmatpush1.msra.mxu0 0.0
    %240 = vmatprep.subr.mxu0 0.0
    %241 = vmatpush1.msra.mxu0 0.0
    %242 = vmatprep.subr.mxu0 0.0
    %243 = vmatpush1.msra.mxu0 0.0
    %244 = vmatprep.subr.mxu0 0.0
    %245 = vmatpush1.msra.mxu0 0.0
    %246 = vmatprep.subr.mxu0 0.0
    %247 = vmatpush1.msra.mxu0 0.0
    %248 = vmatprep.subr.mxu0 0.0
    %249 = vmatpush1.msra.mxu0 0.0
    %250 = vmatprep.mubr.f32.mxu0 0.0
    %v251 = vand.u32 %v174, 4294901760
    %v252 = vsub.f32 %v174, %v251
    %v253 = vand.u32 %v252, 4294901760
    %v254 = vsub.f32 %v252, %v253
    %v255 = vand.u32 %v254, 4294901760
    %256 = vmatmul.mubr.f32.gmra.mrb[0].mxu0 %v255
    %v257 = vpop.f32.mrb[0].mxu0
    %v258 = vadd.f32 0.0, %v257
    %v259 = vpop.f32.mrb[0].mxu0
    %260 = vdwg.mxu0
    %261 = vmatprep.subr.mxu0 0.0
    %v262 = vand.u32 %v166, 4294901760
    %v263 = vsub.f32 %v166, %v262
    %v264 = vand.u32 %v263, 4294901760
    %v265 = vsub.f32 %v263, %v264
    %v266 = vand.u32 %v265, 4294901760
    %267 = vmatpush1.msra.mxu0 %v266
    %268 = vmatprep.subr.mxu0 0.0
    %v269 = vand.u32 %v167, 4294901760
    %v270 = vsub.f32 %v167, %v269
    %v271 = vand.u32 %v270, 4294901760
    %v272 = vsub.f32 %v270, %v271
    %v273 = vand.u32 %v272, 4294901760
    %274 = vmatpush1.msra.mxu0 %v273
    %275 = vmatprep.subr.mxu0 0.0
    %v276 = vand.u32 %v168, 4294901760
    %v277 = vsub.f32 %v168, %v276
    %v278 = vand.u32 %v277, 4294901760
    %v279 = vsub.f32 %v277, %v278
    %v280 = vand.u32 %v279, 4294901760
    %281 = vmatpush1.msra.mxu0 %v280
    %282 = vmatprep.subr.mxu0 0.0
    %v283 = vand.u32 %v169, 4294901760
    %v284 = vsub.f32 %v169, %v283
    %v285 = vand.u32 %v284, 4294901760
    %v286 = vsub.f32 %v284, %v285
    %v287 = vand.u32 %v286, 4294901760
    %288 = vmatpush1.msra.mxu0 %v287
    %289 = vmatprep.subr.mxu0 0.0
    %v290 = vand.u32 %v170, 4294901760
    %v291 = vsub.f32 %v170, %v290
    %v292 = vand.u32 %v291, 4294901760
    %v293 = vsub.f32 %v291, %v292
    %v294 = vand.u32 %v293, 4294901760
    %295 = vmatpush1.msra.mxu0 %v294
    %296 = vmatprep.subr.mxu0 0.0
    %v297 = vand.u32 %v178, 4294901760
    %v298 = vsub.f32 %v178, %v297
    %v299 = vand.u32 %v298, 4294901760
    %v300 = vsub.f32 %v298, %v299
    %v301 = vand.u32 %v300, 4294901760
    %302 = vmatpush1.msra.mxu0 %v301
    %303 = vmatprep.subr.mxu0 0.0
    %304 = vmatpush1.msra.mxu0 0.0
    %305 = vmatprep.subr.mxu0 0.0
    %306 = vmatpush1.msra.mxu0 0.0
    %307 = vmatprep.subr.mxu0 0.0
    %308 = vmatpush1.msra.mxu0 0.0
    %309 = vmatprep.subr.mxu0 0.0
    %310 = vmatpush1.msra.mxu0 0.0
    %311 = vmatprep.subr.mxu0 0.0
    %312 = vmatpush1.msra.mxu0 0.0
    %313 = vmatprep.subr.mxu0 0.0
    %314 = vmatpush1.msra.mxu0 0.0
    %315 = vmatprep.subr.mxu0 0.0
    %316 = vmatpush1.msra.mxu0 0.0
    %317 = vmatprep.subr.mxu0 0.0
    %318 = vmatpush1.msra.mxu0 0.0
    %319 = vmatprep.subr.mxu0 0.0
    %320 = vmatpush1.msra.mxu0 0.0
    %321 = vmatprep.subr.mxu0 0.0
    %322 = vmatpush1.msra.mxu0 0.0
    %323 = vmatprep.subr.mxu0 0.0
    %324 = vmatpush1.msra.mxu0 0.0
    %325 = vmatprep.subr.mxu0 0.0
    %326 = vmatpush1.msra.mxu0 0.0
    %327 = vmatprep.subr.mxu0 0.0
    %328 = vmatpush1.msra.mxu0 0.0
    %329 = vmatprep.subr.mxu0 0.0
    %330 = vmatpush1.msra.mxu0 0.0
    %331 = vmatprep.subr.mxu0 0.0
    %332 = vmatpush1.msra.mxu0 0.0
    %333 = vmatprep.subr.mxu0 0.0
    %334 = vmatpush1.msra.mxu0 0.0
    %335 = vmatprep.subr.mxu0 0.0
    %336 = vmatpush1.msra.mxu0 0.0
    %337 = vmatprep.subr.mxu0 0.0
    %338 = vmatpush1.msra.mxu0 0.0
    %339 = vmatprep.subr.mxu0 0.0
    %340 = vmatpush1.msra.mxu0 0.0
    %341 = vmatprep.subr.mxu0 0.0
    %342 = vmatpush1.msra.mxu0 0.0
    %343 = vmatprep.subr.mxu0 0.0
    %344 = vmatpush1.msra.mxu0 0.0
    %345 = vmatprep.subr.mxu0 0.0
    %346 = vmatpush1.msra.mxu0 0.0
    %347 = vmatprep.subr.mxu0 0.0
    %348 = vmatpush1.msra.mxu0 0.0
    %349 = vmatprep.subr.mxu0 0.0
    %350 = vmatpush1.msra.mxu0 0.0
    %351 = vmatprep.subr.mxu0 0.0
    %352 = vmatpush1.msra.mxu0 0.0
    %353 = vmatprep.subr.mxu0 0.0
    %354 = vmatpush1.msra.mxu0 0.0
    %355 = vmatprep.mubr.f32.mxu0 0.0
    %v356 = vand.u32 %v174, 4294901760
    %357 = vmatmul.mubr.f32.gmra.mrb[0].mxu0 %v356
    %v358 = vpop.f32.mrb[0].mxu0
    %v359 = vadd.f32 %v258, %v358
    %v360 = vpop.f32.mrb[0].mxu0
    %361 = vdwg.mxu0
    %362 = vmatprep.subr.mxu0 0.0
    %v363 = vand.u32 %v166, 4294901760
    %v364 = vsub.f32 %v166, %v363
    %365 = vmatpush1.msra.mxu0 %v364
    %366 = vmatprep.subr.mxu0 0.0
    %v367 = vand.u32 %v167, 4294901760
    %v368 = vsub.f32 %v167, %v367
    %369 = vmatpush1.msra.mxu0 %v368
    %370 = vmatprep.subr.mxu0 0.0
    %v371 = vand.u32 %v168, 4294901760
    %v372 = vsub.f32 %v168, %v371
    %373 = vmatpush1.msra.mxu0 %v372
    %374 = vmatprep.subr.mxu0 0.0
    %v375 = vand.u32 %v169, 4294901760
    %v376 = vsub.f32 %v169, %v375
    %377 = vmatpush1.msra.mxu0 %v376
    %378 = vmatprep.subr.mxu0 0.0
    %v379 = vand.u32 %v170, 4294901760
    %v380 = vsub.f32 %v170, %v379
    %381 = vmatpush1.msra.mxu0 %v380
    %382 = vmatprep.subr.mxu0 0.0
    %v383 = vand.u32 %v178, 4294901760
    %v384 = vsub.f32 %v178, %v383
    %385 = vmatpush1.msra.mxu0 %v384
    %386 = vmatprep.subr.mxu0 0.0
    %387 = vmatpush1.msra.mxu0 0.0
    %388 = vmatprep.subr.mxu0 0.0
    %389 = vmatpush1.msra.mxu0 0.0
    %390 = vmatprep.subr.mxu0 0.0
    %391 = vmatpush1.msra.mxu0 0.0
    %392 = vmatprep.subr.mxu0 0.0
    %393 = vmatpush1.msra.mxu0 0.0
    %394 = vmatprep.subr.mxu0 0.0
    %395 = vmatpush1.msra.mxu0 0.0
    %396 = vmatprep.subr.mxu0 0.0
    %397 = vmatpush1.msra.mxu0 0.0
    %398 = vmatprep.subr.mxu0 0.0
    %399 = vmatpush1.msra.mxu0 0.0
    %400 = vmatprep.subr.mxu0 0.0
    %401 = vmatpush1.msra.mxu0 0.0
    %402 = vmatprep.subr.mxu0 0.0
    %403 = vmatpush1.msra.mxu0 0.0
    %404 = vmatprep.subr.mxu0 0.0
    %405 = vmatpush1.msra.mxu0 0.0
    %406 = vmatprep.subr.mxu0 0.0
    %407 = vmatpush1.msra.mxu0 0.0
    %408 = vmatprep.subr.mxu0 0.0
    %409 = vmatpush1.msra.mxu0 0.0
    %410 = vmatprep.subr.mxu0 0.0
    %411 = vmatpush1.msra.mxu0 0.0
    %412 = vmatprep.subr.mxu0 0.0
    %413 = vmatpush1.msra.mxu0 0.0
    %414 = vmatprep.subr.mxu0 0.0
    %415 = vmatpush1.msra.mxu0 0.0
    %416 = vmatprep.subr.mxu0 0.0
    %417 = vmatpush1.msra.mxu0 0.0
    %418 = vmatprep.subr.mxu0 0.0
    %419 = vmatpush1.msra.mxu0 0.0
    %420 = vmatprep.subr.mxu0 0.0
    %421 = vmatpush1.msra.mxu0 0.0
    %422 = vmatprep.subr.mxu0 0.0
    %423 = vmatpush1.msra.mxu0 0.0
    %424 = vmatprep.subr.mxu0 0.0
    %425 = vmatpush1.msra.mxu0 0.0
    %426 = vmatprep.subr.mxu0 0.0
    %427 = vmatpush1.msra.mxu0 0.0
    %428 = vmatprep.subr.mxu0 0.0
    %429 = vmatpush1.msra.mxu0 0.0
    %430 = vmatprep.subr.mxu0 0.0
    %431 = vmatpush1.msra.mxu0 0.0
    %432 = vmatprep.subr.mxu0 0.0
    %433 = vmatpush1.msra.mxu0 0.0
    %434 = vmatprep.subr.mxu0 0.0
    %435 = vmatpush1.msra.mxu0 0.0
    %436 = vmatprep.subr.mxu0 0.0
    %437 = vmatpush1.msra.mxu0 0.0
    %438 = vmatprep.mubr.f32.mxu0 0.0
    %v439 = vand.u32 %v174, 4294901760
    %v440 = vsub.f32 %v174, %v439
    %441 = vmatmul.mubr.f32.gmra.mrb[0].mxu0 %v440
    %v442 = vpop.f32.mrb[0].mxu0
    %v443 = vadd.f32 %v359, %v442
    %v444 = vpop.f32.mrb[0].mxu0
    %445 = vdwg.mxu0
    %446 = vmatprep.subr.mxu0 0.0
    %v447 = vand.u32 %v166, 4294901760
    %448 = vmatpush1.msra.mxu0 %v447
    %449 = vmatprep.subr.mxu0 0.0
    %v450 = vand.u32 %v167, 4294901760
    %451 = vmatpush1.msra.mxu0 %v450
    %452 = vmatprep.subr.mxu0 0.0
    %v453 = vand.u32 %v168, 4294901760
    %454 = vmatpush1.msra.mxu0 %v453
    %455 = vmatprep.subr.mxu0 0.0
    %v456 = vand.u32 %v169, 4294901760
    %457 = vmatpush1.msra.mxu0 %v456
    %458 = vmatprep.subr.mxu0 0.0
    %v459 = vand.u32 %v170, 4294901760
    %460 = vmatpush1.msra.mxu0 %v459
    %461 = vmatprep.subr.mxu0 0.0
    %v462 = vand.u32 %v178, 4294901760
    %463 = vmatpush1.msra.mxu0 %v462
    %464 = vmatprep.subr.mxu0 0.0
    %465 = vmatpush1.msra.mxu0 0.0
    %466 = vmatprep.subr.mxu0 0.0
    %467 = vmatpush1.msra.mxu0 0.0
    %468 = vmatprep.subr.mxu0 0.0
    %469 = vmatpush1.msra.mxu0 0.0
    %470 = vmatprep.subr.mxu0 0.0
    %471 = vmatpush1.msra.mxu0 0.0
    %472 = vmatprep.subr.mxu0 0.0
    %473 = vmatpush1.msra.mxu0 0.0
    %474 = vmatprep.subr.mxu0 0.0
    %475 = vmatpush1.msra.mxu0 0.0
    %476 = vmatprep.subr.mxu0 0.0
    %477 = vmatpush1.msra.mxu0 0.0
    %478 = vmatprep.subr.mxu0 0.0
    %479 = vmatpush1.msra.mxu0 0.0
    %480 = vmatprep.subr.mxu0 0.0
    %481 = vmatpush1.msra.mxu0 0.0
    %482 = vmatprep.subr.mxu0 0.0
    %483 = vmatpush1.msra.mxu0 0.0
    %484 = vmatprep.subr.mxu0 0.0
    %485 = vmatpush1.msra.mxu0 0.0
    %486 = vmatprep.subr.mxu0 0.0
    %487 = vmatpush1.msra.mxu0 0.0
    %488 = vmatprep.subr.mxu0 0.0
    %489 = vmatpush1.msra.mxu0 0.0
    %490 = vmatprep.subr.mxu0 0.0
    %491 = vmatpush1.msra.mxu0 0.0
    %492 = vmatprep.subr.mxu0 0.0
    %493 = vmatpush1.msra.mxu0 0.0
    %494 = vmatprep.subr.mxu0 0.0
    %495 = vmatpush1.msra.mxu0 0.0
    %496 = vmatprep.subr.mxu0 0.0
    %497 = vmatpush1.msra.mxu0 0.0
    %498 = vmatprep.subr.mxu0 0.0
    %499 = vmatpush1.msra.mxu0 0.0
    %500 = vmatprep.subr.mxu0 0.0
    %501 = vmatpush1.msra.mxu0 0.0
    %502 = vmatprep.subr.mxu0 0.0
    %503 = vmatpush1.msra.mxu0 0.0
    %504 = vmatprep.subr.mxu0 0.0
    %505 = vmatpush1.msra.mxu0 0.0
    %506 = vmatprep.subr.mxu0 0.0
    %507 = vmatpush1.msra.mxu0 0.0
    %508 = vmatprep.subr.mxu0 0.0
    %509 = vmatpush1.msra.mxu0 0.0
    %510 = vmatprep.subr.mxu0 0.0
    %511 = vmatpush1.msra.mxu0 0.0
    %512 = vmatprep.subr.mxu0 0.0
    %513 = vmatpush1.msra.mxu0 0.0
    %514 = vmatprep.subr.mxu0 0.0
    %515 = vmatpush1.msra.mxu0 0.0
    %516 = vmatprep.mubr.f32.mxu0 0.0
    %v517 = vand.u32 %v174, 4294901760
    %v518 = vsub.f32 %v174, %v517
    %v519 = vand.u32 %v518, 4294901760
    %520 = vmatmul.mubr.f32.gmra.mrb[0].mxu0 %v519
    %v521 = vpop.f32.mrb[0].mxu0
    %v522 = vadd.f32 %v443, %v521
    %v523 = vpop.f32.mrb[0].mxu0
    %524 = vdwg.mxu0
    %525 = vmatprep.subr.mxu0 0.0
    %v526 = vand.u32 %v166, 4294901760
    %v527 = vsub.f32 %v166, %v526
    %v528 = vand.u32 %v527, 4294901760
    %529 = vmatpush1.msra.mxu0 %v528
    %530 = vmatprep.subr.mxu0 0.0
    %v531 = vand.u32 %v167, 4294901760
    %v532 = vsub.f32 %v167, %v531
    %v533 = vand.u32 %v532, 4294901760
    %534 = vmatpush1.msra.mxu0 %v533
    %535 = vmatprep.subr.mxu0 0.0
    %v536 = vand.u32 %v168, 4294901760
    %v537 = vsub.f32 %v168, %v536
    %v538 = vand.u32 %v537, 4294901760
    %539 = vmatpush1.msra.mxu0 %v538
    %540 = vmatprep.subr.mxu0 0.0
    %v541 = vand.u32 %v169, 4294901760
    %v542 = vsub.f32 %v169, %v541
    %v543 = vand.u32 %v542, 4294901760
    %544 = vmatpush1.msra.mxu0 %v543
    %545 = vmatprep.subr.mxu0 0.0
    %v546 = vand.u32 %v170, 4294901760
    %v547 = vsub.f32 %v170, %v546
    %v548 = vand.u32 %v547, 4294901760
    %549 = vmatpush1.msra.mxu0 %v548
    %550 = vmatprep.subr.mxu0 0.0
    %v551 = vand.u32 %v178, 4294901760
    %v552 = vsub.f32 %v178, %v551
    %v553 = vand.u32 %v552, 4294901760
    %554 = vmatpush1.msra.mxu0 %v553
    %555 = vmatprep.subr.mxu0 0.0
    %556 = vmatpush1.msra.mxu0 0.0
    %557 = vmatprep.subr.mxu0 0.0
    %558 = vmatpush1.msra.mxu0 0.0
    %559 = vmatprep.subr.mxu0 0.0
    %560 = vmatpush1.msra.mxu0 0.0
    %561 = vmatprep.subr.mxu0 0.0
    %562 = vmatpush1.msra.mxu0 0.0
    %563 = vmatprep.subr.mxu0 0.0
    %564 = vmatpush1.msra.mxu0 0.0
    %565 = vmatprep.subr.mxu0 0.0
    %566 = vmatpush1.msra.mxu0 0.0
    %567 = vmatprep.subr.mxu0 0.0
    %568 = vmatpush1.msra.mxu0 0.0
    %569 = vmatprep.subr.mxu0 0.0
    %570 = vmatpush1.msra.mxu0 0.0
    %571 = vmatprep.subr.mxu0 0.0
    %572 = vmatpush1.msra.mxu0 0.0
    %573 = vmatprep.subr.mxu0 0.0
    %574 = vmatpush1.msra.mxu0 0.0
    %575 = vmatprep.subr.mxu0 0.0
    %576 = vmatpush1.msra.mxu0 0.0
    %577 = vmatprep.subr.mxu0 0.0
    %578 = vmatpush1.msra.mxu0 0.0
    %579 = vmatprep.subr.mxu0 0.0
    %580 = vmatpush1.msra.mxu0 0.0
    %581 = vmatprep.subr.mxu0 0.0
    %582 = vmatpush1.msra.mxu0 0.0
    %583 = vmatprep.subr.mxu0 0.0
    %584 = vmatpush1.msra.mxu0 0.0
    %585 = vmatprep.subr.mxu0 0.0
    %586 = vmatpush1.msra.mxu0 0.0
    %587 = vmatprep.subr.mxu0 0.0
    %588 = vmatpush1.msra.mxu0 0.0
    %589 = vmatprep.subr.mxu0 0.0
    %590 = vmatpush1.msra.mxu0 0.0
    %591 = vmatprep.subr.mxu0 0.0
    %592 = vmatpush1.msra.mxu0 0.0
    %593 = vmatprep.subr.mxu0 0.0
    %594 = vmatpush1.msra.mxu0 0.0
    %595 = vmatprep.subr.mxu0 0.0
    %596 = vmatpush1.msra.mxu0 0.0
    %597 = vmatprep.subr.mxu0 0.0
    %598 = vmatpush1.msra.mxu0 0.0
    %599 = vmatprep.subr.mxu0 0.0
    %600 = vmatpush1.msra.mxu0 0.0
    %601 = vmatprep.subr.mxu0 0.0
    %602 = vmatpush1.msra.mxu0 0.0
    %603 = vmatprep.subr.mxu0 0.0
    %604 = vmatpush1.msra.mxu0 0.0
    %605 = vmatprep.subr.mxu0 0.0
    %606 = vmatpush1.msra.mxu0 0.0
    %607 = vmatprep.mubr.f32.mxu0 0.0
    %v608 = vand.u32 %v174, 4294901760
    %609 = vmatmul.mubr.f32.gmra.mrb[0].mxu0 %v608
    %v610 = vpop.f32.mrb[0].mxu0
    %v611 = vadd.f32 %v522, %v610
    %v612 = vpop.f32.mrb[0].mxu0
    %613 = vdwg.mxu0
    %614 = vmatprep.subr.mxu0 0.0
    %v615 = vand.u32 %v166, 4294901760
    %616 = vmatpush1.msra.mxu0 %v615
    %617 = vmatprep.subr.mxu0 0.0
    %v618 = vand.u32 %v167, 4294901760
    %619 = vmatpush1.msra.mxu0 %v618
    %620 = vmatprep.subr.mxu0 0.0
    %v621 = vand.u32 %v168, 4294901760
    %622 = vmatpush1.msra.mxu0 %v621
    %623 = vmatprep.subr.mxu0 0.0
    %v624 = vand.u32 %v169, 4294901760
    %625 = vmatpush1.msra.mxu0 %v624
    %626 = vmatprep.subr.mxu0 0.0
    %v627 = vand.u32 %v170, 4294901760
    %628 = vmatpush1.msra.mxu0 %v627
    %629 = vmatprep.subr.mxu0 0.0
    %v630 = vand.u32 %v178, 4294901760
    %631 = vmatpush1.msra.mxu0 %v630
    %632 = vmatprep.subr.mxu0 0.0
    %633 = vmatpush1.msra.mxu0 0.0
    %634 = vmatprep.subr.mxu0 0.0
    %635 = vmatpush1.msra.mxu0 0.0
    %636 = vmatprep.subr.mxu0 0.0
    %637 = vmatpush1.msra.mxu0 0.0
    %638 = vmatprep.subr.mxu0 0.0
    %639 = vmatpush1.msra.mxu0 0.0
    %640 = vmatprep.subr.mxu0 0.0
    %641 = vmatpush1.msra.mxu0 0.0
    %642 = vmatprep.subr.mxu0 0.0
    %643 = vmatpush1.msra.mxu0 0.0
    %644 = vmatprep.subr.mxu0 0.0
    %645 = vmatpush1.msra.mxu0 0.0
    %646 = vmatprep.subr.mxu0 0.0
    %647 = vmatpush1.msra.mxu0 0.0
    %648 = vmatprep.subr.mxu0 0.0
    %649 = vmatpush1.msra.mxu0 0.0
    %650 = vmatprep.subr.mxu0 0.0
    %651 = vmatpush1.msra.mxu0 0.0
    %652 = vmatprep.subr.mxu0 0.0
    %653 = vmatpush1.msra.mxu0 0.0
    %654 = vmatprep.subr.mxu0 0.0
    %655 = vmatpush1.msra.mxu0 0.0
    %656 = vmatprep.subr.mxu0 0.0
    %657 = vmatpush1.msra.mxu0 0.0
    %658 = vmatprep.subr.mxu0 0.0
    %659 = vmatpush1.msra.mxu0 0.0
    %660 = vmatprep.subr.mxu0 0.0
    %661 = vmatpush1.msra.mxu0 0.0
    %662 = vmatprep.subr.mxu0 0.0
    %663 = vmatpush1.msra.mxu0 0.0
    %664 = vmatprep.subr.mxu0 0.0
    %665 = vmatpush1.msra.mxu0 0.0
    %666 = vmatprep.subr.mxu0 0.0
    %667 = vmatpush1.msra.mxu0 0.0
    %668 = vmatprep.subr.mxu0 0.0
    %669 = vmatpush1.msra.mxu0 0.0
    %670 = vmatprep.subr.mxu0 0.0
    %671 = vmatpush1.msra.mxu0 0.0
    %672 = vmatprep.subr.mxu0 0.0
    %673 = vmatpush1.msra.mxu0 0.0
    %674 = vmatprep.subr.mxu0 0.0
    %675 = vmatpush1.msra.mxu0 0.0
    %676 = vmatprep.subr.mxu0 0.0
    %677 = vmatpush1.msra.mxu0 0.0
    %678 = vmatprep.subr.mxu0 0.0
    %679 = vmatpush1.msra.mxu0 0.0
    %680 = vmatprep.subr.mxu0 0.0
    %681 = vmatpush1.msra.mxu0 0.0
    %682 = vmatprep.subr.mxu0 0.0
    %683 = vmatpush1.msra.mxu0 0.0
    %684 = vmatprep.mubr.f32.mxu0 0.0
    %v685 = vand.u32 %v174, 4294901760
    %686 = vmatmul.mubr.f32.gmra.mrb[0].mxu0 %v685
    %v687 = vpop.f32.mrb[0].mxu0
    %v688 = vadd.f32 %v611, %v687
    %v689 = vpop.f32.mrb[0].mxu0
    %690 = vdwg.mxu0
    %691 = vst [vmem:[#allocation7] sm:$0xff] %v688
    // Predicated region
    $region18: #{tpu_custom_call.1} parent=1 // pred_check
      _
    $region19: #{tpu_custom_call.1} parent=1 // pred_check_branch
      %693 = sbr.rel (0) target = $region21
    $region20: #{tpu_custom_call.1} parent=1 // pred_region
      %s695 = ssub.s32 128, 128
      %696 = vsyncadd [#allocation4], %s695
      %s698 = sshll.u32 [#allocation7], 4
      %s699 = int_to_ptr.vmem [resolvable:$true] %s698
      %701 = dma.vmem_to_hbm [thread:$0]  %s699, 128, %s2, [#allocation4]
    $region21: #{tpu_custom_call.1} parent=1 // pred_fallthru
      _
    // Predicated region
    $region22: #{tpu_custom_call.1} parent=1 // pred_check
      _
    $region23: #{tpu_custom_call.1} parent=1 // pred_check_branch
      %703 = sbr.rel (0) target = $region25
    $region24: #{tpu_custom_call.1} parent=1 // pred_region
      %704 = dma.done [#allocation4], 128
    $region25: #{tpu_custom_call.1} parent=1 // pred_fallthru
      _
    %705 = vsyncpa [#allocation3], 1
    %706 = vsyncpa [#allocation6], 1
    %707 = vsyncpa [#allocation4], 1

</llo_original>
